<compile_context>
chip_gen: v7x
topology: tpu7x:2x2x1
jax: 0.10.0
libtpu: 0.0.40
codegen_flags: <defaults>
</compile_context>

<pallas_src>
import functools
import math

import jax
import jax.numpy as jnp
from jax.experimental import pallas as pl
from jax.experimental.pallas import tpu as pltpu

f32 = jnp.float32
bf16 = jnp.bfloat16


def _round_up(x, m):
    return ((x + m - 1) // m) * m


def _choose_tiling(n):
    """Return (n_pad, tm, tk): row-tile TM and lane-tile TK for adj (N, N)."""
    if n <= 256:
        n_pad = _round_up(max(n, 8), 128)
        return n_pad, n_pad, n_pad               # single tile
    if n <= 1024:
        # two row tiles (feeds both v7x TensorCores), full-width lane dim.
        n_pad = _round_up(n, 256)
        return n_pad, n_pad // 2, n_pad
    # Large N: asymmetric tiles, TM=512 rows x TK=1024 lanes (HBM-bound regime).
    n_pad = _round_up(n, 1024)
    return n_pad, 512, 1024


# ------------------------------- kernels -----------------------------------

def support_corr_kernel(x_ref, w_ref, coef_ref, b_ref, sup_ref, corr_ref):
    """support = x @ W (bf16);  corr = coef * support + bias (f32).

    coef = eps*diag(adj) - bf16(diag(adj)), so adding corr to the bf16
    adj @ support product makes the effective diagonal coefficient exactly
    eps*diag(adj) in f32 (matching the reference's diagonal rewrite).
    """
    s = jnp.dot(x_ref[...], w_ref[...], preferred_element_type=jnp.float32)
    s_b = s.astype(jnp.bfloat16)
    sup_ref[...] = s_b
    corr_ref[...] = coef_ref[...] * s_b.astype(jnp.float32) + b_ref[...]


def gcn_spmm_kernel(adj_ref, sup_ref, corr_ref, out_ref, *, tk, sup_resident):
    """out[i] = corr[i] + sum_k adj[i, k] @ support[k]   (f32 accumulation)."""
    k = pl.program_id(1)

    @pl.when(k == 0)
    def _():
        out_ref[...] = corr_ref[...]        # init with diag correction + bias

    if sup_resident:
        off = pl.multiple_of(k * tk, tk)
        sup = sup_ref[pl.ds(off, tk), :]    # slice the resident support
    else:
        sup = sup_ref[...]

    out_ref[...] += jnp.dot(adj_ref[...], sup, preferred_element_type=jnp.float32)


# ------------------------------- wrapper ------------------------------------

def gcn_forward(adj, x, weight, eps, bias):
    """GCN forward.  adj: (N, N), x: (N, in_f), weight: (in_f, out_f), bias: (out_f,)."""
    n, in_f = x.shape
    out_f = weight.shape[1]

    n_pad, tm, tk = _choose_tiling(n)
    out_pad = _round_up(out_f, 128)          # lane-dense stores; don't grow further

    ni = n_pad // tm
    nk = n_pad // tk

    # --- wrapper-side prep (cast to bf16 BEFORE padding to halve pad traffic) ---
    adj = adj.astype(f32)
    diag = jnp.diagonal(adj)
    # Rank-1 diagonal-correction coefficient.  Using the bf16-rounded diagonal
    # makes the kernel's effective diagonal exactly eps*diag in f32.
    coef = (eps.astype(f32).reshape(()) * diag
            - diag.astype(bf16).astype(f32)).reshape(n, 1)

    adj_p = jnp.pad(adj.astype(bf16), ((0, n_pad - n), (0, n_pad - n)))
    x_p = jnp.pad(x.astype(bf16), ((0, n_pad - n), (0, 0)))
    w_p = jnp.pad(weight.astype(bf16), ((0, 0), (0, out_pad - out_f)))
    coef_p = jnp.pad(coef, ((0, n_pad - n), (0, 0)))
    bias_p = jnp.pad(bias.astype(f32), (0, out_pad - out_f)).reshape(1, out_pad)

    # ---- stage 1: support = x @ W  and  corr = coef*support + bias ----------
    support, corr = pl.pallas_call(
        support_corr_kernel,
        out_shape=(
            jax.ShapeDtypeStruct((n_pad, out_pad), bf16),
            jax.ShapeDtypeStruct((n_pad, out_pad), f32),
        ),
        grid=(ni,),
        in_specs=[
            pl.BlockSpec((tm, in_f), lambda i: (i, 0)),        # x row tile
            pl.BlockSpec((in_f, out_pad), lambda i: (0, 0)),   # full weight
            pl.BlockSpec((tm, 1), lambda i: (i, 0)),           # coef row tile
            pl.BlockSpec((1, out_pad), lambda i: (0, 0)),      # bias
        ],
        out_specs=(
            pl.BlockSpec((tm, out_pad), lambda i: (i, 0)),     # support (bf16)
            pl.BlockSpec((tm, out_pad), lambda i: (i, 0)),     # corr (f32)
        ),
        compiler_params=pltpu.CompilerParams(dimension_semantics=("parallel",)),
    )(x_p, w_p, coef_p, bias_p)

    # ---- stage 2: out = adj @ support, accumulated in the f32 output block ---
    # Hold support fully resident in VMEM when it fits: DMA'd once instead of
    # re-fetched for every row tile.
    sup_resident = (n_pad * out_pad * 2) <= (8 << 20)
    if sup_resident:
        sup_spec = pl.BlockSpec((n_pad, out_pad), lambda i, k: (0, 0))
        sup_vmem = 2 * n_pad * out_pad * 2
    else:
        sup_spec = pl.BlockSpec((tk, out_pad), lambda i, k: (k, 0))
        sup_vmem = 2 * tk * out_pad * 2

    # adj is the dominant HBM stream; give it a 3-deep pipeline when there is
    # an actual k reduction (smooths the DMA bubble at i-boundaries).
    if nk > 1:
        adj_spec = pl.BlockSpec((tm, tk), lambda i, k: (i, k),
                                pipeline_mode=pl.Buffered(3))
        adj_bufs = 3
    else:
        adj_spec = pl.BlockSpec((tm, tk), lambda i, k: (i, k))
        adj_bufs = 2

    vmem_est = (adj_bufs * tm * tk * 2          # adj bf16 tiles
                + sup_vmem                      # support
                + 2 * tm * out_pad * 4          # corr f32 tiles
                + 2 * tm * out_pad * 4)         # f32 output block (accumulator)
    vmem_limit = max(32 << 20, min(int(1.25 * vmem_est) + (4 << 20), 56 << 20))

    out_p = pl.pallas_call(
        functools.partial(gcn_spmm_kernel, tk=tk, sup_resident=sup_resident),
        out_shape=jax.ShapeDtypeStruct((n_pad, out_pad), f32),
        grid=(ni, nk),
        in_specs=[
            adj_spec,                                          # adj tile (bf16)
            sup_spec,                                          # support
            pl.BlockSpec((tm, out_pad), lambda i, k: (i, 0)),  # corr (incl. bias)
        ],
        out_specs=pl.BlockSpec((tm, out_pad), lambda i, k: (i, 0)),
        compiler_params=pltpu.CompilerParams(
            dimension_semantics=("parallel", "arbitrary"),
            vmem_limit_bytes=vmem_limit,
        ),
    )(adj_p, support, corr)

    return out_p[:n, :out_f]


# ------------------------- params / reference -------------------------------

def init_gcn_params(key, in_features, out_features):
    """Deterministic parameter init mirroring GCN.reset_parameters()."""
    k_w, k_b = jax.random.split(key)
    stdv = 0.95 / math.sqrt(out_features)
    weight = jax.random.uniform(
        k_w, (in_features, out_features), jnp.float32, minval=-stdv, maxval=stdv
    )
    stdv_eps = 0.21 / math.sqrt(1.0)
    eps = jnp.full((1,), stdv_eps, jnp.float32)
    bias = jax.random.uniform(
        k_b, (out_features,), jnp.float32, minval=-stdv, maxval=stdv
    )
    return weight, eps, bias


def gcn_reference(adj, x, weight, eps, bias):
    """Pure-JAX f32 reference mirroring the torch forward."""
    v = eps * jnp.diag(adj)
    mask = jnp.eye(adj.shape[0], dtype=adj.dtype)
    adj_mod = mask * jnp.diag(v) + (1.0 - mask) * adj
    support = x @ weight
    return adj_mod @ support + bias


# --------------------------------- test --------------------------------------

if __name__ == "__main__":
    key = jax.random.PRNGKey(0)

    # Shapes exercise: single-tile path (N=8), two-row-tile path (N=300),
    # and the asymmetric multi-(i,k)-tile path with resident support and
    # Buffered(3) adj pipelining (N=1300 -> grid (4, 2)).
    for (N, IN_F, OUT_F) in [(8, 16, 32), (300, 16, 32), (1300, 16, 32)]:
        k_adj, k_x, k_params, key = jax.random.split(key, 4)

        adj = jax.random.uniform(k_adj, (N, N), jnp.float32)
        adj = 0.5 * (adj + adj.T)          # symmetric adjacency-like matrix
        x = jax.random.normal(k_x, (N, IN_F), jnp.float32)
        weight, eps, bias = init_gcn_params(k_params, IN_F, OUT_F)

        out = jax.block_until_ready(gcn_forward(adj, x, weight, eps, bias))
        ref = gcn_reference(adj, x, weight, eps, bias)

        assert out.shape == (N, OUT_F)
        # bf16 MXU inputs -> rounding error grows ~sqrt(N) with reduction length.
        atol = max(3e-2, 6e-3 * math.sqrt(N))
        assert jnp.allclose(out, ref, atol=atol, rtol=5e-2), f"mismatch at N={N}"

    print("KERNEL_OK")
</pallas_src>

<mosaic_0001>
module attributes {stable_mosaic.version = 11 : i64} {
  func.func @support_corr_kernel(%arg0: i32, %arg1: memref<128x16xbf16, #tpu.memory_space<vmem>>, %arg2: memref<16x128xbf16, #tpu.memory_space<vmem>>, %arg3: memref<128x1xf32, #tpu.memory_space<vmem>>, %arg4: memref<1x128xf32, #tpu.memory_space<vmem>>, %arg5: memref<128x128xbf16, #tpu.memory_space<vmem>>, %arg6: memref<128x128xf32, #tpu.memory_space<vmem>>) attributes {dimension_semantics = [#tpu.dimension_semantics<parallel>], iteration_bounds = array<i64: 1>, scalar_prefetch = 0 : i64, scratch_operands = 0 : i64, tpu.core_type = #tpu.core_type<tc>, window_params = [{transform_indices = @transform_0, window_bounds = array<i64: 128, 16>}, {pipeline_mode = #tpu.pipeline_mode<synchronous>, transform_indices = @transform_1, window_bounds = array<i64: 16, 128>}, {transform_indices = @transform_2, window_bounds = array<i64: 128, 1>}, {pipeline_mode = #tpu.pipeline_mode<synchronous>, transform_indices = @transform_3, window_bounds = array<i64: 1, 128>}, {transform_indices = @transform_4, window_bounds = array<i64: 128, 128>}, {transform_indices = @transform_5, window_bounds = array<i64: 128, 128>}]} {
    %c0 = arith.constant 0 : index
    %c0_0 = arith.constant 0 : index
    %0 = vector.load %arg1[%c0, %c0_0] : memref<128x16xbf16, #tpu.memory_space<vmem>>, vector<128x16xbf16>
    %c0_1 = arith.constant 0 : index
    %c0_2 = arith.constant 0 : index
    %1 = vector.load %arg2[%c0_1, %c0_2] : memref<16x128xbf16, #tpu.memory_space<vmem>>, vector<16x128xbf16>
    %cst = arith.constant dense<0.000000e+00> : vector<128x128xf32>
    %2 = tpu.matmul %0, %1, %cst {dimension_numbers = #tpu.dot_dimension_numbers<[1], [0], [0], [1], [0, 0, 1, 1], [], []>} : vector<128x16xbf16>, vector<16x128xbf16>, vector<128x128xf32> -> vector<128x128xf32>
    %3 = arith.truncf %2 : vector<128x128xf32> to vector<128x128xbf16>
    %c0_3 = arith.constant 0 : index
    %c0_4 = arith.constant 0 : index
    %4 = vector.load %arg5[%c0_3, %c0_4] : memref<128x128xbf16, #tpu.memory_space<vmem>>, vector<128x128xbf16>
    tpu.vector_store %arg5[%c0_3, %c0_4], %3 {strides = array<i32>} : memref<128x128xbf16, #tpu.memory_space<vmem>>, vector<128x128xbf16>,
    %c0_5 = arith.constant 0 : index
    %c0_6 = arith.constant 0 : index
    %5 = vector.load %arg3[%c0_5, %c0_6] : memref<128x1xf32, #tpu.memory_space<vmem>>, vector<128x1xf32>
    %6 = arith.extf %3 : vector<128x128xbf16> to vector<128x128xf32>
    %7 = vector.broadcast %5 : vector<128x1xf32> to vector<128x128xf32>
    %8 = arith.mulf %7, %6 : vector<128x128xf32>
    %c0_7 = arith.constant 0 : index
    %c0_8 = arith.constant 0 : index
    %9 = vector.load %arg4[%c0_7, %c0_8] : memref<1x128xf32, #tpu.memory_space<vmem>>, vector<1x128xf32>
    %10 = vector.broadcast %9 : vector<1x128xf32> to vector<128x128xf32>
    %11 = arith.addf %8, %10 : vector<128x128xf32>
    %c0_9 = arith.constant 0 : index
    %c0_10 = arith.constant 0 : index
    %12 = vector.load %arg6[%c0_9, %c0_10] : memref<128x128xf32, #tpu.memory_space<vmem>>, vector<128x128xf32>
    tpu.vector_store %arg6[%c0_9, %c0_10], %11 {strides = array<i32>} : memref<128x128xf32, #tpu.memory_space<vmem>>, vector<128x128xf32>,
    return
  }
  func.func @transform_0(%arg0: i32) -> (i32, i32) {
    %c0_i32 = arith.constant 0 : i32
    %c0_i32_0 = arith.constant 0 : i32
    return %arg0, %c0_i32 : i32, i32
  }
  func.func @transform_1(%arg0: i32) -> (i32, i32) {
    %c0_i32 = arith.constant 0 : i32
    %c0_i32_0 = arith.constant 0 : i32
    %c0_i32_1 = arith.constant 0 : i32
    return %c0_i32, %c0_i32_0 : i32, i32
  }
  func.func @transform_2(%arg0: i32) -> (i32, i32) {
    %c0_i32 = arith.constant 0 : i32
    %c0_i32_0 = arith.constant 0 : i32
    return %arg0, %c0_i32 : i32, i32
  }
  func.func @transform_3(%arg0: i32) -> (i32, i32) {
    %c0_i32 = arith.constant 0 : i32
    %c0_i32_0 = arith.constant 0 : i32
    %c0_i32_1 = arith.constant 0 : i32
    return %c0_i32, %c0_i32_0 : i32, i32
  }
  func.func @transform_4(%arg0: i32) -> (i32, i32) {
    %c0_i32 = arith.constant 0 : i32
    %c0_i32_0 = arith.constant 0 : i32
    return %arg0, %c0_i32 : i32, i32
  }
  func.func @transform_5(%arg0: i32) -> (i32, i32) {
    %c0_i32 = arith.constant 0 : i32
    %c0_i32_0 = arith.constant 0 : i32
    return %arg0, %c0_i32 : i32, i32
  }
}

</mosaic_0001>

<llo_original>
// kernel: tpu_custom_call.1
$region0: #{tpu_custom_call.1}
  #allocation0 [shape = 'u32[]', space=smem, size = 0x4, offset = 0x4, fixed_abs, tag = 'smem constant byte address 0x4 - core index']
  #allocation1 [shape = 'u32[144,128]{1,0:T(1,128)}', space=vmem, size = 0x12000, scoped, tag = 'internal scratch']
  %s0 = inlined_call_operand.vmem [shape: bf16[128,16], index: 0, kind: input, shape index: {}]
  %s1 = inlined_call_operand.vmem [shape: bf16[16,128], index: 1, kind: input, shape index: {}]
  %s2 = inlined_call_operand.vmem [shape: f32[128,1], index: 2, kind: input, shape index: {}]
  %s3 = inlined_call_operand.vmem [shape: f32[1,128], index: 3, kind: input, shape index: {}]
  %s4 = inlined_call_operand.hbm [shape: bf16[128,128], index: 4, kind: output, shape index: {0}]
  %s5 = inlined_call_operand.hbm [shape: f32[128,128], index: 5, kind: output, shape index: {1}]
  %6 = xla_tuple %s4, %s5
  %s7 = sld [smem:[#allocation0]]
  $region34: #{tpu_custom_call.1} parent=0
    _
  %s9 = ssub.s32 1, %s7
  %s10 = scalar_select 0, %s9, %s7
  $region1: #{tpu_custom_call.1} parent=0
    #allocation2 [shape = 'u8[32768]{0}', space=vmem, size = 0x8000, scoped, tag = 'output window, operand 0, single buffered']
    #allocation3 [shape = 's32[1]{0}', space=sflag, size = 0x4, scoped, tag = 'scoped memory for tpu_custom_call.1']
    #allocation4 [shape = 'u8[65536]{0}', space=vmem, size = 0x10000, scoped, tag = 'output window, operand 1, single buffered']
    #allocation5 [shape = 's32[1]{0}', space=sflag, size = 0x4, scoped, tag = 'scoped memory for tpu_custom_call.1']
    %11 = vsyncpa [#allocation3], 0
    %12 = vsyncpa [#allocation5], 0
    // Predicated region
    $region2: #{tpu_custom_call.1} parent=1 // pred_check
      _
    $region3: #{tpu_custom_call.1} parent=1 // pred_check_branch
      %14 = sbr.rel (0) target = $region5
    $region4: #{tpu_custom_call.1} parent=1 // pred_region
      _
    $region5: #{tpu_custom_call.1} parent=1 // pred_fallthru
      _
    // Predicated region
    $region6: #{tpu_custom_call.1} parent=1 // pred_check
      _
    $region7: #{tpu_custom_call.1} parent=1 // pred_check_branch
      %16 = sbr.rel (0) target = $region9
    $region8: #{tpu_custom_call.1} parent=1 // pred_region
      _
    $region9: #{tpu_custom_call.1} parent=1 // pred_fallthru
      _
    // Predicated region
    $region10: #{tpu_custom_call.1} parent=1 // pred_check
      _
    $region11: #{tpu_custom_call.1} parent=1 // pred_check_branch
      %18 = sbr.rel (0) target = $region13
    $region12: #{tpu_custom_call.1} parent=1 // pred_region
      _
    $region13: #{tpu_custom_call.1} parent=1 // pred_fallthru
      _
    // Predicated region
    $region14: #{tpu_custom_call.1} parent=1 // pred_check
      _
    $region15: #{tpu_custom_call.1} parent=1 // pred_check_branch
      %20 = sbr.rel (0) target = $region17
    $region16: #{tpu_custom_call.1} parent=1 // pred_region
      _
    $region17: #{tpu_custom_call.1} parent=1 // pred_fallthru
      _
    %v22 = vld [vmem:[%s0] sm:$0xf]
    %v23 = vld [vmem:[%s0 + $0x4] sm:$0xf]
    %v24 = vld [vmem:[%s0 + $0x8] sm:$0xf]
    %v25 = vld [vmem:[%s0 + $0xc] sm:$0xf]
    %v26 = vld [vmem:[%s0 + $0x10] sm:$0xf]
    %v27 = vld [vmem:[%s0 + $0x14] sm:$0xf]
    %v28 = vld [vmem:[%s0 + $0x18] sm:$0xf]
    %v29 = vld [vmem:[%s0 + $0x1c] sm:$0xf]
    %v30 = vld [vmem:[%s0 + $0x20] sm:$0xf]
    %v31 = vld [vmem:[%s0 + $0x24] sm:$0xf]
    %v32 = vld [vmem:[%s0 + $0x28] sm:$0xf]
    %v33 = vld [vmem:[%s0 + $0x2c] sm:$0xf]
    %v34 = vld [vmem:[%s0 + $0x30] sm:$0xf]
    %v35 = vld [vmem:[%s0 + $0x34] sm:$0xf]
    %v36 = vld [vmem:[%s0 + $0x38] sm:$0xf]
    %v37 = vld [vmem:[%s0 + $0x3c] sm:$0xf]
    %v38 = vld [vmem:[%s1] sm:$0xf]
    %v39 = vld [vmem:[%s1 + $0x4] sm:$0xf]
    %v56 = vunpack.c.l.b16 %v22
    %v57 = vunpack.c.l.b16 %v23
    %v58 = vunpack.c.l.b16 %v24
    %v59 = vunpack.c.l.b16 %v25
    %v60 = vunpack.c.l.b16 %v26
    %v61 = vunpack.c.l.b16 %v27
    %v62 = vunpack.c.l.b16 %v28
    %v63 = vunpack.c.l.b16 %v29
    %v64 = vunpack.c.l.b16 %v30
    %v65 = vunpack.c.l.b16 %v31
    %v66 = vunpack.c.l.b16 %v32
    %v67 = vunpack.c.l.b16 %v33
    %v68 = vunpack.c.l.b16 %v34
    %v69 = vunpack.c.l.b16 %v35
    %v70 = vunpack.c.l.b16 %v36
    %v71 = vunpack.c.l.b16 %v37
    %v72 = vpack.c.b16 %v57, %v56
    %v73 = vpack.c.b16 %v59, %v58
    %v74 = vpack.c.b16 %v61, %v60
    %v75 = vpack.c.b16 %v63, %v62
    %v76 = vpack.c.b16 %v65, %v64
    %v77 = vpack.c.b16 %v67, %v66
    %v78 = vpack.c.b16 %v69, %v68
    %v79 = vpack.c.b16 %v71, %v70
    %v82 = vunpack.c.l.b16 %v38
    %v83 = vunpack.c.l.b16 %v39
    %v84 = vpack.c.b16 %v83, %v82
    %vm86 = vcmask 130048
    %v88 = vsel %vm86, %v72, 0
    %v91 = vsel %vm86, %v73, 0
    %v94 = vsel %vm86, %v74, 0
    %v97 = vsel %vm86, %v75, 0
    %v100 = vsel %vm86, %v76, 0
    %v103 = vsel %vm86, %v77, 0
    %v106 = vsel %vm86, %v78, 0
    %v109 = vsel %vm86, %v79, 0
    %111 = vmatprep.subr.bf16.mxu0 0
    %112 = vmatpush1.bf16.msra.mxu0 %v84
    %113 = vmatprep.subr.bf16.mxu0 0
    %114 = vmatpush1.bf16.msra.mxu0 0
    %115 = vmatprep.subr.bf16.mxu0 0
    %116 = vmatpush1.bf16.msra.mxu0 0
    %117 = vmatprep.subr.bf16.mxu0 0
    %118 = vmatpush1.bf16.msra.mxu0 0
    %119 = vmatprep.subr.bf16.mxu0 0
    %120 = vmatpush1.bf16.msra.mxu0 0
    %121 = vmatprep.subr.bf16.mxu0 0
    %122 = vmatpush1.bf16.msra.mxu0 0
    %123 = vmatprep.subr.bf16.mxu0 0
    %124 = vmatpush1.bf16.msra.mxu0 0
    %125 = vmatprep.subr.bf16.mxu0 0
    %126 = vmatpush1.bf16.msra.mxu0 0
    %127 = vmatprep.subr.bf16.mxu0 0
    %128 = vmatpush1.bf16.msra.mxu0 0
    %129 = vmatprep.subr.bf16.mxu0 0
    %130 = vmatpush1.bf16.msra.mxu0 0
    %131 = vmatprep.subr.bf16.mxu0 0
    %132 = vmatpush1.bf16.msra.mxu0 0
    %133 = vmatprep.subr.bf16.mxu0 0
    %134 = vmatpush1.bf16.msra.mxu0 0
    %135 = vmatprep.subr.bf16.mxu0 0
    %136 = vmatpush1.bf16.msra.mxu0 0
    %137 = vmatprep.subr.bf16.mxu0 0
    %138 = vmatpush1.bf16.msra.mxu0 0
    %139 = vmatprep.subr.bf16.mxu0 0
    %140 = vmatpush1.bf16.msra.mxu0 0
    %141 = vmatprep.subr.bf16.mxu0 0
    %142 = vmatpush1.bf16.msra.mxu0 0
    %143 = vmatprep.mubr.bf16.mxu0 0
    %144 = vmatmul.mubr.bf16.gmra.mrb[0].mxu0 %v88
    %v145 = vpop.f32.mrb[0].mxu0
    %v146 = vadd.f32 0.0, %v145
    %v147 = vpop.f32.mrb[0].mxu0
    %v148 = vpop.f32.mrb[0].mxu0
    %v149 = vadd.f32 0.0, %v148
    %v150 = vpop.f32.mrb[0].mxu0
    %151 = vmatprep.mubr.bf16.mxu0 0
    %152 = vmatmul.mubr.bf16.gmra.mrb[0].mxu0 %v91
    %v153 = vpop.f32.mrb[0].mxu0
    %v154 = vadd.f32 0.0, %v153
    %v155 = vpop.f32.mrb[0].mxu0
    %v156 = vpop.f32.mrb[0].mxu0
    %v157 = vadd.f32 0.0, %v156
    %v158 = vpop.f32.mrb[0].mxu0
    %159 = vmatprep.mubr.bf16.mxu0 0
    %160 = vmatmul.mubr.bf16.gmra.mrb[0].mxu0 %v94
    %v161 = vpop.f32.mrb[0].mxu0
    %v162 = vadd.f32 0.0, %v161
    %v163 = vpop.f32.mrb[0].mxu0
    %v164 = vpop.f32.mrb[0].mxu0
    %v165 = vadd.f32 0.0, %v164
    %v166 = vpop.f32.mrb[0].mxu0
    %167 = vmatprep.mubr.bf16.mxu0 0
    %168 = vmatmul.mubr.bf16.gmra.mrb[0].mxu0 %v97
    %v169 = vpop.f32.mrb[0].mxu0
    %v170 = vadd.f32 0.0, %v169
    %v171 = vpop.f32.mrb[0].mxu0
    %v172 = vpop.f32.mrb[0].mxu0
    %v173 = vadd.f32 0.0, %v172
    %v174 = vpop.f32.mrb[0].mxu0
    %175 = vmatprep.mubr.bf16.mxu0 0
    %176 = vmatmul.mubr.bf16.gmra.mrb[0].mxu0 %v100
    %v177 = vpop.f32.mrb[0].mxu0
    %v178 = vadd.f32 0.0, %v177
    %v179 = vpop.f32.mrb[0].mxu0
    %v180 = vpop.f32.mrb[0].mxu0
    %v181 = vadd.f32 0.0, %v180
    %v182 = vpop.f32.mrb[0].mxu0
    %183 = vmatprep.mubr.bf16.mxu0 0
    %184 = vmatmul.mubr.bf16.gmra.mrb[0].mxu0 %v103
    %v185 = vpop.f32.mrb[0].mxu0
    %v186 = vadd.f32 0.0, %v185
    %v187 = vpop.f32.mrb[0].mxu0
    %v188 = vpop.f32.mrb[0].mxu0
    %v189 = vadd.f32 0.0, %v188
    %v190 = vpop.f32.mrb[0].mxu0
    %191 = vmatprep.mubr.bf16.mxu0 0
    %192 = vmatmul.mubr.bf16.gmra.mrb[0].mxu0 %v106
    %v193 = vpop.f32.mrb[0].mxu0
    %v194 = vadd.f32 0.0, %v193
    %v195 = vpop.f32.mrb[0].mxu0
    %v196 = vpop.f32.mrb[0].mxu0
    %v197 = vadd.f32 0.0, %v196
    %v198 = vpop.f32.mrb[0].mxu0
    %199 = vmatprep.mubr.bf16.mxu0 0
    %200 = vmatmul.mubr.bf16.gmra.mrb[0].mxu0 %v109
    %v201 = vpop.f32.mrb[0].mxu0
    %v202 = vadd.f32 0.0, %v201
    %v203 = vpop.f32.mrb[0].mxu0
    %v204 = vpop.f32.mrb[0].mxu0
    %v205 = vadd.f32 0.0, %v204
    %v206 = vpop.f32.mrb[0].mxu0
    %207 = vdwg.mxu0
    %v208 = vpack.c.bf16 %v149, %v146
    %v209 = vpack.c.bf16 %v157, %v154
    %v210 = vpack.c.bf16 %v165, %v162
    %v211 = vpack.c.bf16 %v173, %v170
    %v212 = vpack.c.bf16 %v181, %v178
    %v213 = vpack.c.bf16 %v189, %v186
    %v214 = vpack.c.bf16 %v197, %v194
    %v215 = vpack.c.bf16 %v205, %v202
    %v224 = vunpack.c.l.b16 %v208
    %v225 = vunpack.c.h.b16 %v208
    %v226 = vunpack.c.l.b16 %v209
    %v227 = vunpack.c.h.b16 %v209
    %v228 = vunpack.c.l.b16 %v210
    %v229 = vunpack.c.h.b16 %v210
    %v230 = vunpack.c.l.b16 %v211
    %v231 = vunpack.c.h.b16 %v211
    %v232 = vunpack.c.l.b16 %v212
    %v233 = vunpack.c.h.b16 %v212
    %v234 = vunpack.c.l.b16 %v213
    %v235 = vunpack.c.h.b16 %v213
    %v236 = vunpack.c.l.b16 %v214
    %v237 = vunpack.c.h.b16 %v214
    %v238 = vunpack.c.l.b16 %v215
    %v239 = vunpack.c.h.b16 %v215
    %v240 = vpack.c.b16 %v224, %v224
    %v241 = vpack.c.b16 %v225, %v225
    %v242 = vpack.c.b16 %v226, %v226
    %v243 = vpack.c.b16 %v227, %v227
    %v244 = vpack.c.b16 %v228, %v228
    %v245 = vpack.c.b16 %v229, %v229
    %v246 = vpack.c.b16 %v230, %v230
    %v247 = vpack.c.b16 %v231, %v231
    %v248 = vpack.c.b16 %v232, %v232
    %v249 = vpack.c.b16 %v233, %v233
    %v250 = vpack.c.b16 %v234, %v234
    %v251 = vpack.c.b16 %v235, %v235
    %v252 = vpack.c.b16 %v236, %v236
    %v253 = vpack.c.b16 %v237, %v237
    %v254 = vpack.c.b16 %v238, %v238
    %v255 = vpack.c.b16 %v239, %v239
    %272 = vst [vmem:[#allocation2] sm:$0xf] %v240
    %273 = vst [vmem:[#allocation2 + $0x4] sm:$0xf] %v241
    %274 = vst [vmem:[#allocation2 + $0x8] sm:$0xf] %v242
    %275 = vst [vmem:[#allocation2 + $0xc] sm:$0xf] %v243
    %276 = vst [vmem:[#allocation2 + $0x10] sm:$0xf] %v244
    %277 = vst [vmem:[#allocation2 + $0x14] sm:$0xf] %v245
    %278 = vst [vmem:[#allocation2 + $0x18] sm:$0xf] %v246
    %279 = vst [vmem:[#allocation2 + $0x1c] sm:$0xf] %v247
    %280 = vst [vmem:[#allocation2 + $0x20] sm:$0xf] %v248
    %281 = vst [vmem:[#allocation2 + $0x24] sm:$0xf] %v249
    %282 = vst [vmem:[#allocation2 + $0x28] sm:$0xf] %v250
    %283 = vst [vmem:[#allocation2 + $0x2c] sm:$0xf] %v251
    %284 = vst [vmem:[#allocation2 + $0x30] sm:$0xf] %v252
    %285 = vst [vmem:[#allocation2 + $0x34] sm:$0xf] %v253
    %286 = vst [vmem:[#allocation2 + $0x38] sm:$0xf] %v254
    %287 = vst [vmem:[#allocation2 + $0x3c] sm:$0xf] %v255
    %v288 = vld [vmem:[%s2] sm:$0xff]
    %v289 = vld [vmem:[%s2 + $0x8] sm:$0xff]
    %v290 = vld [vmem:[%s2 + $0x10] sm:$0xff]
    %v291 = vld [vmem:[%s2 + $0x18] sm:$0xff]
    %v292 = vld [vmem:[%s2 + $0x20] sm:$0xff]
    %v293 = vld [vmem:[%s2 + $0x28] sm:$0xff]
    %v294 = vld [vmem:[%s2 + $0x30] sm:$0xff]
    %v295 = vld [vmem:[%s2 + $0x38] sm:$0xff]
    %v296 = vld [vmem:[%s2 + $0x40] sm:$0xff]
    %v297 = vld [vmem:[%s2 + $0x48] sm:$0xff]
    %v298 = vld [vmem:[%s2 + $0x50] sm:$0xff]
    %v299 = vld [vmem:[%s2 + $0x58] sm:$0xff]
    %v300 = vld [vmem:[%s2 + $0x60] sm:$0xff]
    %v301 = vld [vmem:[%s2 + $0x68] sm:$0xff]
    %v302 = vld [vmem:[%s2 + $0x70] sm:$0xff]
    %v303 = vld [vmem:[%s2 + $0x78] sm:$0xff]
    %v304 = vunpack.c.l.bf16 %v208
    %v305 = vunpack.c.h.bf16 %v208
    %v306 = vunpack.c.l.bf16 %v209
    %v307 = vunpack.c.h.bf16 %v209
    %v308 = vunpack.c.l.bf16 %v210
    %v309 = vunpack.c.h.bf16 %v210
    %v310 = vunpack.c.l.bf16 %v211
    %v311 = vunpack.c.h.bf16 %v211
    %v312 = vunpack.c.l.bf16 %v212
    %v313 = vunpack.c.h.bf16 %v212
    %v314 = vunpack.c.l.bf16 %v213
    %v315 = vunpack.c.h.bf16 %v213
    %v316 = vunpack.c.l.bf16 %v214
    %v317 = vunpack.c.h.bf16 %v214
    %v318 = vunpack.c.l.bf16 %v215
    %v319 = vunpack.c.h.bf16 %v215
    %321 = vset.pattern.permute.xlu0 0
    %322 = vperm.xlu0 %321, %v288
    %v323 = vpop.permute.xlu0 %322
    %326 = vset.pattern.permute.xlu0 0
    %327 = vperm.xlu0 %326, %v289
    %v328 = vpop.permute.xlu0 %327
    %331 = vset.pattern.permute.xlu0 0
    %332 = vperm.xlu0 %331, %v290
    %v333 = vpop.permute.xlu0 %332
    %336 = vset.pattern.permute.xlu0 0
    %337 = vperm.xlu0 %336, %v291
    %v338 = vpop.permute.xlu0 %337
    %341 = vset.pattern.permute.xlu0 0
    %342 = vperm.xlu0 %341, %v292
    %v343 = vpop.permute.xlu0 %342
    %346 = vset.pattern.permute.xlu0 0
    %347 = vperm.xlu0 %346, %v293
    %v348 = vpop.permute.xlu0 %347
    %351 = vset.pattern.permute.xlu0 0
    %352 = vperm.xlu0 %351, %v294
    %v353 = vpop.permute.xlu0 %352
    %356 = vset.pattern.permute.xlu0 0
    %357 = vperm.xlu0 %356, %v295
    %v358 = vpop.permute.xlu0 %357
    %361 = vset.pattern.permute.xlu0 0
    %362 = vperm.xlu0 %361, %v296
    %v363 = vpop.permute.xlu0 %362
    %366 = vset.pattern.permute.xlu0 0
    %367 = vperm.xlu0 %366, %v297
    %v368 = vpop.permute.xlu0 %367
    %371 = vset.pattern.permute.xlu0 0
    %372 = vperm.xlu0 %371, %v298
    %v373 = vpop.permute.xlu0 %372
    %376 = vset.pattern.permute.xlu0 0
    %377 = vperm.xlu0 %376, %v299
    %v378 = vpop.permute.xlu0 %377
    %381 = vset.pattern.permute.xlu0 0
    %382 = vperm.xlu0 %381, %v300
    %v383 = vpop.permute.xlu0 %382
    %386 = vset.pattern.permute.xlu0 0
    %387 = vperm.xlu0 %386, %v301
    %v388 = vpop.permute.xlu0 %387
    %391 = vset.pattern.permute.xlu0 0
    %392 = vperm.xlu0 %391, %v302
    %v393 = vpop.permute.xlu0 %392
    %396 = vset.pattern.permute.xlu0 0
    %397 = vperm.xlu0 %396, %v303
    %v398 = vpop.permute.xlu0 %397
    %v400 = vmul.f32 %v323, %v304
    %v401 = vmul.f32 %v328, %v305
    %v402 = vmul.f32 %v333, %v306
    %v403 = vmul.f32 %v338, %v307
    %v404 = vmul.f32 %v343, %v308
    %v405 = vmul.f32 %v348, %v309
    %v406 = vmul.f32 %v353, %v310
    %v407 = vmul.f32 %v358, %v311
    %v408 = vmul.f32 %v363, %v312
    %v409 = vmul.f32 %v368, %v313
    %v410 = vmul.f32 %v373, %v314
    %v411 = vmul.f32 %v378, %v315
    %v412 = vmul.f32 %v383, %v316
    %v413 = vmul.f32 %v388, %v317
    %v414 = vmul.f32 %v393, %v318
    %v415 = vmul.f32 %v398, %v319
    %v416 = vld [vmem:[%s3] sm:$0x1]
    %v418 = vlaneseq
    %v419 = vshrl.u32 %v418, 7
    %v420 = vsub.s32 0, %v419
    %v421 = vrot.slane %v416, %v420
    %v423 = vadd.f32 %v400, %v421
    %v424 = vadd.f32 %v401, %v421
    %v425 = vadd.f32 %v402, %v421
    %v426 = vadd.f32 %v403, %v421
    %v427 = vadd.f32 %v404, %v421
    %v428 = vadd.f32 %v405, %v421
    %v429 = vadd.f32 %v406, %v421
    %v430 = vadd.f32 %v407, %v421
    %v431 = vadd.f32 %v408, %v421
    %v432 = vadd.f32 %v409, %v421
    %v433 = vadd.f32 %v410, %v421
    %v434 = vadd.f32 %v411, %v421
    %v435 = vadd.f32 %v412, %v421
    %v436 = vadd.f32 %v413, %v421
    %v437 = vadd.f32 %v414, %v421
    %v438 = vadd.f32 %v415, %v421
    %439 = vst [vmem:[#allocation4] sm:$0xff] %v423
    %440 = vst [vmem:[#allocation4 + $0x8] sm:$0xff] %v424
    %441 = vst [vmem:[#allocation4 + $0x10] sm:$0xff] %v425
    %442 = vst [vmem:[#allocation4 + $0x18] sm:$0xff] %v426
    %443 = vst [vmem:[#allocation4 + $0x20] sm:$0xff] %v427
    %444 = vst [vmem:[#allocation4 + $0x28] sm:$0xff] %v428
    %445 = vst [vmem:[#allocation4 + $0x30] sm:$0xff] %v429
    %446 = vst [vmem:[#allocation4 + $0x38] sm:$0xff] %v430
    %447 = vst [vmem:[#allocation4 + $0x40] sm:$0xff] %v431
    %448 = vst [vmem:[#allocation4 + $0x48] sm:$0xff] %v432
    %449 = vst [vmem:[#allocation4 + $0x50] sm:$0xff] %v433
    %450 = vst [vmem:[#allocation4 + $0x58] sm:$0xff] %v434
    %451 = vst [vmem:[#allocation4 + $0x60] sm:$0xff] %v435
    %452 = vst [vmem:[#allocation4 + $0x68] sm:$0xff] %v436
    %453 = vst [vmem:[#allocation4 + $0x70] sm:$0xff] %v437
    %454 = vst [vmem:[#allocation4 + $0x78] sm:$0xff] %v438
    // Predicated region
    $region18: #{tpu_custom_call.1} parent=1 // pred_check
      _
    $region19: #{tpu_custom_call.1} parent=1 // pred_check_branch
      %456 = sbr.rel (0) target = $region21
    $region20: #{tpu_custom_call.1} parent=1 // pred_region
      %s458 = ssub.s32 1024, 1024
      %459 = vsyncadd [#allocation3], %s458
      %s460 = sshll.u32 [#allocation2], 4
      %s461 = int_to_ptr.vmem [resolvable:$true] %s460
      %466 = dma.vmem_to_hbm [thread:$0]  %s461, 1024, %s4, [#allocation3], 64, 64, 4
    $region21: #{tpu_custom_call.1} parent=1 // pred_fallthru
      _
    // Predicated region
    $region22: #{tpu_custom_call.1} parent=1 // pred_check
      _
    $region23: #{tpu_custom_call.1} parent=1 // pred_check_branch
      %468 = sbr.rel (0) target = $region25
    $region24: #{tpu_custom_call.1} parent=1 // pred_region
      %s470 = ssub.s32 2048, 2048
      %471 = vsyncadd [#allocation5], %s470
      %s472 = sshll.u32 [#allocation4], 4
      %s473 = int_to_ptr.vmem [resolvable:$true] %s472
      %478 = dma.vmem_to_hbm [thread:$0]  %s473, 2048, %s5, [#allocation5], 128, 128, 8
    $region25: #{tpu_custom_call.1} parent=1 // pred_fallthru
      _
    // Predicated region
    $region26: #{tpu_custom_call.1} parent=1 // pred_check
      _
    $region27: #{tpu_custom_call.1} parent=1 // pred_check_branch
      %480 = sbr.rel (0) target = $region29
    $region28: #{tpu_custom_call.1} parent=1 // pred_region
      %481 = dma.done [#allocation3], 1024
    $region29: #{tpu_custom_call.1} parent=1 // pred_fallthru
      _
    // Predicated region
    $region30: #{tpu_custom_call.1} parent=1 // pred_check
      _
    $region31: #{tpu_custom_call.1} parent=1 // pred_check_branch
      %483 = sbr.rel (0) target = $region33
    $region32: #{tpu_custom_call.1} parent=1 // pred_region
      %484 = dma.done [#allocation5], 2048
    $region33: #{tpu_custom_call.1} parent=1 // pred_fallthru
      _
    %485 = vsyncpa [#allocation3], 1
    %486 = vsyncpa [#allocation5], 1

</llo_original>
